<compile_context>
chip_gen: v5e
topology: v5e:2x2
jax: 0.10.0
libtpu: 0.0.40
codegen_flags: <defaults>
</compile_context>

<pallas_src>
import functools
import math

import jax
import jax.numpy as jnp
from jax.experimental import pallas as pl
from jax.experimental.pallas import tpu as pltpu

LANE = 128
TARGET_BLOCK_BYTES = 2 * 1024 * 1024   # per-input block target (widest dtype)
NCORES = 2                             # leading parallel axis; no-op on 1-TC chips


def _roi_sums_kernel(p_ref, t_ref, o_ref, acc_ref, *,
                     tr, rows, spc, first_masked, any_masked, logits):
    c = pl.program_id(0)   # "core" (parallel) axis
    s = pl.program_id(1)   # sequential reduction axis

    @pl.when(s == 0)
    def _init():
        acc_ref[...] = jnp.zeros_like(acc_ref)

    p = p_ref[...].astype(jnp.float32)
    t = t_ref[...].astype(jnp.float32)
    if logits:
        p = jax.nn.sigmoid(p)

    def _accum(pv, tv):
        # Reduce only down to 8 sublanes: pure full-vreg VALU adds in the hot
        # loop; the sublane/lane collapse happens once, in the wrapper.
        pv = pv.reshape(tr // 8, 8, LANE)
        tv = tv.reshape(tr // 8, 8, LANE)
        acc_ref[0] += jnp.sum(pv, axis=0)
        acc_ref[1] += jnp.sum(tv, axis=0)
        acc_ref[2] += jnp.sum(pv * tv, axis=0)

    if any_masked:
        gb = c * spc + s   # logical (unclamped) global block index

        @pl.when(gb < first_masked)
        def _fast():
            _accum(p, t)

        @pl.when(gb >= first_masked)
        def _masked():
            # Row-only compare; select (not multiply) so garbage/NaN from the
            # partial DMA block never propagates into the sums.
            row = jax.lax.broadcasted_iota(jnp.int32, (tr, LANE), 0)
            valid = (gb * tr + row) < rows
            _accum(jnp.where(valid, p, 0.0), jnp.where(valid, t, 0.0))
    else:
        _accum(p, t)

    @pl.when(s == pl.num_programs(1) - 1)
    def _fin():
        o_ref[0] = acc_ref[...]


def _partial_sums_jax(p, t, logits):
    p = p.astype(jnp.float32)
    t = t.astype(jnp.float32)
    if logits:
        p = jax.nn.sigmoid(p)
    return jnp.sum(p), jnp.sum(t), jnp.sum(p * t)


def _narrow(x):
    # Keep narrow dtypes narrow in HBM; only booleans need a cast (to int8).
    if x.dtype == jnp.bool_:
        return x.astype(jnp.int8)
    return x


def roi_loss(preds, targets, *, beta=3, logits=False):
    """Pallas equivalent of ROILoss.forward(preds, targets)."""
    assert preds.shape == targets.shape
    n = preds.shape[0]
    total = math.prod(preds.shape)

    p = _narrow(jnp.ravel(preds))
    t = _narrow(jnp.ravel(targets))

    min_item = min(p.dtype.itemsize, t.dtype.itemsize)
    max_item = max(p.dtype.itemsize, t.dtype.itemsize)
    gran = max(8, 32 // min_item)          # sublane granule of narrowest dtype
    rows = total // LANE
    tail = total - rows * LANE

    sp = jnp.float32(0.0)
    st = jnp.float32(0.0)
    tp = jnp.float32(0.0)
    body = 0

    if rows >= gran:
        body = rows * LANE
        if tail:
            p_body = p[:body]
            t_body = t[:body]
        else:
            p_body, t_body = p, t
        p2 = p_body.reshape(rows, LANE)
        t2 = t_body.reshape(rows, LANE)

        # Row tile sized by bytes of the widest input, multiple of the granule.
        tr_target = max(gran, (TARGET_BLOCK_BYTES // (LANE * max_item)) // gran * gran)
        tr = min(tr_target, (rows // gran) * gran)
        steps = (rows + tr - 1) // tr
        ncores = min(NCORES, steps)
        spc = (steps + ncores - 1) // ncores
        nblocks = ncores * spc
        first_masked = rows // tr               # first block that may hold garbage
        any_masked = nblocks > first_masked

        if nblocks == steps:
            idx_map = lambda c, s: (c * spc + s, 0)
        else:
            # Clamp overshoot blocks of the last core to the last real block;
            # the in-kernel mask (based on the unclamped index) zeroes them.
            idx_map = lambda c, s: (jnp.minimum(c * spc + s, steps - 1), 0)

        kernel = functools.partial(
            _roi_sums_kernel, tr=tr, rows=rows, spc=spc,
            first_masked=first_masked, any_masked=any_masked, logits=logits)

        out = pl.pallas_call(
            kernel,
            out_shape=jax.ShapeDtypeStruct((ncores, 3, 8, LANE), jnp.float32),
            grid_spec=pltpu.PrefetchScalarGridSpec(
                num_scalar_prefetch=0,
                grid=(ncores, spc),
                in_specs=[
                    pl.BlockSpec((tr, LANE), idx_map),
                    pl.BlockSpec((tr, LANE), idx_map),
                ],
                out_specs=pl.BlockSpec((1, 3, 8, LANE),
                                       lambda c, s: (c, 0, 0, 0)),
                scratch_shapes=[pltpu.VMEM((3, 8, LANE), jnp.float32)],
            ),
            compiler_params=pltpu.CompilerParams(
                dimension_semantics=("parallel", "arbitrary")),
        )(p2, t2)

        part = jnp.sum(out, axis=(0, 2, 3))     # collapse cores + sublanes + lanes
        sp, st, tp = part[0], part[1], part[2]

    if body < total:
        # <=127-element lane tail (or the whole input when it is tiny).
        sp_t, st_t, tp_t = _partial_sums_jax(p[body:], t[body:], logits)
        sp = sp + sp_t
        st = st + st_t
        tp = tp + tp_t

    # fp = sp - tp, fn = st - tp  =>  fp + 2*tp + beta*fn = sp + beta*st + (1-beta)*tp
    e = jnp.float32(1e-8)
    bf = jnp.float32(beta)
    denom = sp + bf * st + (jnp.float32(1.0) - bf) * tp
    dice = jnp.float32(2.0) * (tp + e) / (denom + e) / jnp.float32(n)
    return jnp.float32(1.0) - dice


def roi_loss_ref(preds, targets, *, beta=3, logits=False):
    """Pure-JAX reference mirroring the PyTorch module."""
    if logits:
        preds = jax.nn.sigmoid(preds)
    e = 1e-8
    n = preds.shape[0]
    p = preds.reshape(n, -1).astype(jnp.float32)
    t = targets.reshape(n, -1).astype(jnp.float32)
    tp = jnp.sum(p * t)
    fp = jnp.sum(p * (1 - t))
    fn = jnp.sum(t * (1 - p))
    dice = 2 * (tp + e) / (fp + 2 * tp + beta * fn + e) / n
    return 1 - dice


if __name__ == "__main__":
    key = jax.random.PRNGKey(0)
    k1, k2, k3, k4 = jax.random.split(key, 4)

    # Case 1: 128-aligned NCHW input, float targets (copy-free path, 1 block).
    preds = jax.random.uniform(k1, (2, 4, 16, 16), dtype=jnp.float32)
    targets = (jax.random.uniform(k2, (2, 4, 16, 16)) > 0.5).astype(jnp.float32)
    loss = jax.block_until_ready(roi_loss(preds, targets, beta=3, logits=False))
    ref = roi_loss_ref(preds, targets, beta=3, logits=False)
    assert jnp.allclose(loss, ref, rtol=1e-5, atol=1e-6), (loss, ref)

    # Case 2: logits + bool targets (kept int8 in HBM) + ragged total (4320):
    # 33 lane-rows -> 2-block grid (one per "core"), masked last block, plus a
    # 96-element tail finished in the wrapper.
    preds2 = jax.random.normal(k3, (2, 4, 18, 30), dtype=jnp.float32)
    targets2 = jax.random.uniform(k4, (2, 4, 18, 30)) > 0.5      # bool
    loss2 = jax.block_until_ready(roi_loss(preds2, targets2, beta=3, logits=True))
    ref2 = roi_loss_ref(preds2, targets2, beta=3, logits=True)
    assert jnp.allclose(loss2, ref2, rtol=1e-5, atol=1e-6), (loss2, ref2)

    # Case 3: tiny input below the kernel threshold (wrapper-only fallback).
    preds3 = jax.random.uniform(k1, (2, 3, 4, 5), dtype=jnp.float32)
    targets3 = (jax.random.uniform(k2, (2, 3, 4, 5)) > 0.5).astype(jnp.float32)
    loss3 = jax.block_until_ready(roi_loss(preds3, targets3, beta=3, logits=False))
    ref3 = roi_loss_ref(preds3, targets3, beta=3, logits=False)
    assert jnp.allclose(loss3, ref3, rtol=1e-5, atol=1e-6), (loss3, ref3)

    print("KERNEL_OK")
</pallas_src>

<mosaic_0001>
module attributes {stable_mosaic.version = 11 : i64} {
  func.func @_roi_sums_kernel(%arg0: i32, %arg1: i32, %arg2: memref<16x128xf32, #tpu.memory_space<vmem>>, %arg3: memref<16x128xf32, #tpu.memory_space<vmem>>, %arg4: memref<1x3x8x128xf32, #tpu.memory_space<vmem>>, %arg5: memref<3x8x128xf32, #tpu.memory_space<vmem>>) attributes {dimension_semantics = [#tpu.dimension_semantics<parallel>, #tpu.dimension_semantics<arbitrary>], iteration_bounds = array<i64: 1, 1>, scalar_prefetch = 0 : i64, scratch_operands = 1 : i64, tpu.core_type = #tpu.core_type<tc>, window_params = [{transform_indices = @transform_0, window_bounds = array<i64: 16, 128>}, {transform_indices = @transform_1, window_bounds = array<i64: 16, 128>}, {transform_indices = @transform_2, window_bounds = array<i64: 1, 3, 8, 128>}]} {
    %c0_i32 = arith.constant 0 : i32
    %0 = arith.cmpi eq, %arg1, %c0_i32 : i32
    %1 = arith.extui %0 : i1 to i32
    %c0_i32_0 = arith.constant 0 : i32
    %2 = arith.cmpi ne, %1, %c0_i32_0 : i32
    scf.if %2 {
      %cst_24 = arith.constant 0.000000e+00 : f32
      %32 = vector.broadcast %cst_24 : f32 to vector<3x8x128xf32>
      %c0_25 = arith.constant 0 : index
      %c0_26 = arith.constant 0 : index
      %c0_27 = arith.constant 0 : index
      %33 = vector.load %arg5[%c0_25, %c0_26, %c0_27] : memref<3x8x128xf32, #tpu.memory_space<vmem>>, vector<3x8x128xf32>
      tpu.vector_store %arg5[%c0_25, %c0_26, %c0_27], %32 {strides = array<i32>} : memref<3x8x128xf32, #tpu.memory_space<vmem>>, vector<3x8x128xf32>,
    } else {
    }
    %c0 = arith.constant 0 : index
    %c0_1 = arith.constant 0 : index
    %3 = vector.load %arg2[%c0, %c0_1] : memref<16x128xf32, #tpu.memory_space<vmem>>, vector<16x128xf32>
    %c0_2 = arith.constant 0 : index
    %c0_3 = arith.constant 0 : index
    %4 = vector.load %arg3[%c0_2, %c0_3] : memref<16x128xf32, #tpu.memory_space<vmem>>, vector<16x128xf32>
    %5 = vector.shape_cast %3 : vector<16x128xf32> to vector<2x8x128xf32>
    %6 = vector.shape_cast %4 : vector<16x128xf32> to vector<2x8x128xf32>
    %c0_4 = arith.constant 0 : index
    %c0_5 = arith.constant 0 : index
    %c0_6 = arith.constant 0 : index
    %7 = vector.load %arg5[%c0_4, %c0_5, %c0_6] : memref<3x8x128xf32, #tpu.memory_space<vmem>>, vector<1x8x128xf32>
    %8 = vector.shape_cast %7 : vector<1x8x128xf32> to vector<8x128xf32>
    %cst = arith.constant dense<0.000000e+00> : vector<8x128xf32>
    %9 = vector.multi_reduction <add>, %5, %cst [0] : vector<2x8x128xf32> to vector<8x128xf32>
    %10 = arith.addf %8, %9 : vector<8x128xf32>
    %c0_7 = arith.constant 0 : index
    %c0_8 = arith.constant 0 : index
    %c0_9 = arith.constant 0 : index
    %11 = vector.load %arg5[%c0_7, %c0_8, %c0_9] : memref<3x8x128xf32, #tpu.memory_space<vmem>>, vector<1x8x128xf32>
    %12 = vector.shape_cast %11 : vector<1x8x128xf32> to vector<8x128xf32>
    %13 = vector.shape_cast %10 : vector<8x128xf32> to vector<1x8x128xf32>
    tpu.vector_store %arg5[%c0_7, %c0_8, %c0_9], %13 {strides = array<i32>} : memref<3x8x128xf32, #tpu.memory_space<vmem>>, vector<1x8x128xf32>,
    %c1 = arith.constant 1 : index
    %c0_10 = arith.constant 0 : index
    %c0_11 = arith.constant 0 : index
    %14 = vector.load %arg5[%c1, %c0_10, %c0_11] : memref<3x8x128xf32, #tpu.memory_space<vmem>>, vector<1x8x128xf32>
    %15 = vector.shape_cast %14 : vector<1x8x128xf32> to vector<8x128xf32>
    %cst_12 = arith.constant dense<0.000000e+00> : vector<8x128xf32>
    %16 = vector.multi_reduction <add>, %6, %cst_12 [0] : vector<2x8x128xf32> to vector<8x128xf32>
    %17 = arith.addf %15, %16 : vector<8x128xf32>
    %c1_13 = arith.constant 1 : index
    %c0_14 = arith.constant 0 : index
    %c0_15 = arith.constant 0 : index
    %18 = vector.load %arg5[%c1_13, %c0_14, %c0_15] : memref<3x8x128xf32, #tpu.memory_space<vmem>>, vector<1x8x128xf32>
    %19 = vector.shape_cast %18 : vector<1x8x128xf32> to vector<8x128xf32>
    %20 = vector.shape_cast %17 : vector<8x128xf32> to vector<1x8x128xf32>
    tpu.vector_store %arg5[%c1_13, %c0_14, %c0_15], %20 {strides = array<i32>} : memref<3x8x128xf32, #tpu.memory_space<vmem>>, vector<1x8x128xf32>,
    %c2 = arith.constant 2 : index
    %c0_16 = arith.constant 0 : index
    %c0_17 = arith.constant 0 : index
    %21 = vector.load %arg5[%c2, %c0_16, %c0_17] : memref<3x8x128xf32, #tpu.memory_space<vmem>>, vector<1x8x128xf32>
    %22 = vector.shape_cast %21 : vector<1x8x128xf32> to vector<8x128xf32>
    %23 = arith.mulf %5, %6 : vector<2x8x128xf32>
    %cst_18 = arith.constant dense<0.000000e+00> : vector<8x128xf32>
    %24 = vector.multi_reduction <add>, %23, %cst_18 [0] : vector<2x8x128xf32> to vector<8x128xf32>
    %25 = arith.addf %22, %24 : vector<8x128xf32>
    %c2_19 = arith.constant 2 : index
    %c0_20 = arith.constant 0 : index
    %c0_21 = arith.constant 0 : index
    %26 = vector.load %arg5[%c2_19, %c0_20, %c0_21] : memref<3x8x128xf32, #tpu.memory_space<vmem>>, vector<1x8x128xf32>
    %27 = vector.shape_cast %26 : vector<1x8x128xf32> to vector<8x128xf32>
    %28 = vector.shape_cast %25 : vector<8x128xf32> to vector<1x8x128xf32>
    tpu.vector_store %arg5[%c2_19, %c0_20, %c0_21], %28 {strides = array<i32>} : memref<3x8x128xf32, #tpu.memory_space<vmem>>, vector<1x8x128xf32>,
    %c0_i32_22 = arith.constant 0 : i32
    %29 = arith.cmpi eq, %arg1, %c0_i32_22 : i32
    %30 = arith.extui %29 : i1 to i32
    %c0_i32_23 = arith.constant 0 : i32
    %31 = arith.cmpi ne, %30, %c0_i32_23 : i32
    scf.if %31 {
      %c0_24 = arith.constant 0 : index
      %c0_25 = arith.constant 0 : index
      %c0_26 = arith.constant 0 : index
      %32 = vector.load %arg5[%c0_24, %c0_25, %c0_26] : memref<3x8x128xf32, #tpu.memory_space<vmem>>, vector<3x8x128xf32>
      %c0_27 = arith.constant 0 : index
      %c0_28 = arith.constant 0 : index
      %c0_29 = arith.constant 0 : index
      %c0_30 = arith.constant 0 : index
      %33 = vector.load %arg4[%c0_27, %c0_28, %c0_29, %c0_30] : memref<1x3x8x128xf32, #tpu.memory_space<vmem>>, vector<1x3x8x128xf32>
      %34 = vector.shape_cast %33 : vector<1x3x8x128xf32> to vector<3x8x128xf32>
      %35 = vector.shape_cast %32 : vector<3x8x128xf32> to vector<1x3x8x128xf32>
      tpu.vector_store %arg4[%c0_27, %c0_28, %c0_29, %c0_30], %35 {strides = array<i32>} : memref<1x3x8x128xf32, #tpu.memory_space<vmem>>, vector<1x3x8x128xf32>,
    } else {
    }
    return
  }
  func.func @transform_0(%arg0: i32, %arg1: i32) -> (i32, i32) {
    %c1_i32 = arith.constant 1 : i32
    %0 = arith.muli %arg0, %c1_i32 : i32
    %1 = arith.addi %0, %arg1 : i32
    %c0_i32 = arith.constant 0 : i32
    %c0_i32_0 = arith.constant 0 : i32
    return %1, %c0_i32 : i32, i32
  }
  func.func @transform_1(%arg0: i32, %arg1: i32) -> (i32, i32) {
    %c1_i32 = arith.constant 1 : i32
    %0 = arith.muli %arg0, %c1_i32 : i32
    %1 = arith.addi %0, %arg1 : i32
    %c0_i32 = arith.constant 0 : i32
    %c0_i32_0 = arith.constant 0 : i32
    return %1, %c0_i32 : i32, i32
  }
  func.func @transform_2(%arg0: i32, %arg1: i32) -> (i32, i32, i32, i32) {
    %c0_i32 = arith.constant 0 : i32
    %c0_i32_0 = arith.constant 0 : i32
    %c0_i32_1 = arith.constant 0 : i32
    %c0_i32_2 = arith.constant 0 : i32
    return %arg0, %c0_i32, %c0_i32_0, %c0_i32_1 : i32, i32, i32, i32
  }
}

</mosaic_0001>

<llo_original>
// kernel: tpu_custom_call.1
$region0: #{tpu_custom_call.1}
  #allocation0 [shape = 'u32[]', space=smem, size = 0x4, offset = 0x4, fixed_abs, tag = 'smem constant byte address 0x4 - core index']
  #allocation1 [shape = 'u32[72,128]{1,0:T(1,128)}', space=vmem, size = 0x9000, scoped, tag = 'internal scratch']
  #allocation2 [shape = 'f32[3,8,128]{2,1,0:T(8,128)}', space=vmem, size = 0x3000, scoped, tag = 'scratch operand']
  %s0 = inlined_call_operand.hbm [shape: f32[16,128], index: 0, kind: input, shape index: {}]
  %s1 = inlined_call_operand.hbm [shape: f32[16,128], index: 1, kind: input, shape index: {}]
  %s2 = inlined_call_operand.hbm [shape: f32[1,3,8,128], index: 2, kind: output, shape index: {}]
  %s3 = sld [smem:[#allocation0]]
  $region34: #{tpu_custom_call.1} parent=0
    _
  %s5 = ssub.s32 1, %s3
  %s6 = scalar_select 0, %s5, %s3
  $region1: #{tpu_custom_call.1} parent=0
    #allocation3 [shape = 'u8[8192]{0}', space=vmem, size = 0x2000, scoped, tag = 'input window, operand 0, single buffered']
    #allocation4 [shape = 's32[1]{0}', space=sflag, size = 0x4, scoped, tag = 'scoped memory for tpu_custom_call.1']
    #allocation5 [shape = 's32[1]{0}', space=sflag, size = 0x4, scoped, tag = 'scoped memory for tpu_custom_call.1']
    #allocation6 [shape = 'u8[8192]{0}', space=vmem, size = 0x2000, scoped, tag = 'input window, operand 1, single buffered']
    #allocation7 [shape = 's32[1]{0}', space=sflag, size = 0x4, scoped, tag = 'scoped memory for tpu_custom_call.1']
    #allocation8 [shape = 'u8[12288]{0}', space=vmem, size = 0x3000, scoped, tag = 'output window, operand 0, single buffered']
    %7 = vsyncpa [#allocation4], 0
    %8 = vsyncpa [#allocation7], 0
    %9 = vsyncpa [#allocation5], 0
    // Predicated region
    $region2: #{tpu_custom_call.1} parent=1 // pred_check
      _
    $region3: #{tpu_custom_call.1} parent=1 // pred_check_branch
      %11 = sbr.rel (0) target = $region5
    $region4: #{tpu_custom_call.1} parent=1 // pred_region
      %s12 = sadd.s32 0, 0
      %s13 = smul.u32 2, %s12
      %15 = vsyncadd [#allocation4], 0
      %s16 = smul.addr %s13, 8
      %s17 = scalar_lea.hbm %s0, %s16
      %s18 = sshll.u32 %s17, 4
      %s19 = int_to_ptr.hbm [resolvable:$true] %s18
      %s20 = sshll.u32 [#allocation3], 4
      %s21 = int_to_ptr.vmem [resolvable:$true] %s20
      %26 = dma.hbm_to_vmem [thread:$0]  %s19, 256, %s21, [#allocation4], 128, 128, 8
    $region5: #{tpu_custom_call.1} parent=1 // pred_fallthru
      _
    // Predicated region
    $region6: #{tpu_custom_call.1} parent=1 // pred_check
      _
    $region7: #{tpu_custom_call.1} parent=1 // pred_check_branch
      %28 = sbr.rel (0) target = $region9
    $region8: #{tpu_custom_call.1} parent=1 // pred_region
      %s29 = sadd.s32 0, 0
      %s30 = smul.u32 2, %s29
      %32 = vsyncadd [#allocation7], 0
      %s33 = smul.addr %s30, 8
      %s34 = scalar_lea.hbm %s1, %s33
      %s35 = sshll.u32 %s34, 4
      %s36 = int_to_ptr.hbm [resolvable:$true] %s35
      %s37 = sshll.u32 [#allocation6], 4
      %s38 = int_to_ptr.vmem [resolvable:$true] %s37
      %43 = dma.hbm_to_vmem [thread:$0]  %s36, 256, %s38, [#allocation7], 128, 128, 8
    $region9: #{tpu_custom_call.1} parent=1 // pred_fallthru
      _
    // Predicated region
    $region10: #{tpu_custom_call.1} parent=1 // pred_check
      _
    $region11: #{tpu_custom_call.1} parent=1 // pred_check_branch
      %45 = sbr.rel (0) target = $region13
    $region12: #{tpu_custom_call.1} parent=1 // pred_region
      %47 = dma.done [#allocation4], 256
    $region13: #{tpu_custom_call.1} parent=1 // pred_fallthru
      _
    // Predicated region
    $region14: #{tpu_custom_call.1} parent=1 // pred_check
      _
    $region15: #{tpu_custom_call.1} parent=1 // pred_check_branch
      %49 = sbr.rel (0) target = $region17
    $region16: #{tpu_custom_call.1} parent=1 // pred_region
      %51 = dma.done [#allocation7], 256
    $region17: #{tpu_custom_call.1} parent=1 // pred_fallthru
      _
    %s52 = sadd.s32 0, 0
    %s53 = smul.u32 2, %s52
    %s54 = sadd.s32 0, 0
    %s55 = smul.u32 2, %s54
    %p56 = scmp.eq.s32.totalorder 0, 0
    // Predicated region
    $region18: #{tpu_custom_call.1} parent=1 // pred_check
      %p57 = pneg %p56
    $region19: #{tpu_custom_call.1} parent=1 // pred_check_branch
      %59 = sbr.rel (%p57) target = $region21
    $region20: #{tpu_custom_call.1} parent=1 // pred_region
      %60 = vst [vmem:[#allocation2] sm:$0xff] 0.0
      %61 = vst [vmem:[#allocation2 + $0x8] sm:$0xff] 0.0
      %62 = vst [vmem:[#allocation2 + $0x10] sm:$0xff] 0.0
    $region21: #{tpu_custom_call.1} parent=1 // pred_fallthru
      _
    %v63 = vld [vmem:[#allocation3] sm:$0xff]
    %v64 = vld [vmem:[#allocation3 + $0x8] sm:$0xff]
    %v65 = vld [vmem:[#allocation6] sm:$0xff]
    %v66 = vld [vmem:[#allocation6 + $0x8] sm:$0xff]
    %v67 = vld [vmem:[#allocation2] sm:$0xff]
    %v68 = vadd.f32 %v63, %v64
    %v69 = vadd.f32 %v67, %v68
    %70 = vst [vmem:[#allocation2] sm:$0xff] %v69
    %s71 = scalar_lea.vmem [#allocation2], 8
    %v72 = vld [vmem:[%s71] sm:$0xff]
    %v73 = vadd.f32 %v65, %v66
    %v74 = vadd.f32 %v72, %v73
    %75 = vst [vmem:[%s71] sm:$0xff] %v74
    %s76 = scalar_lea.vmem [#allocation2], 16
    %v77 = vld [vmem:[%s76] sm:$0xff]
    %v78 = vmul.f32 %v63, %v65
    %v79 = vmul.f32 %v64, %v66
    %v80 = vadd.f32 %v78, %v79
    %v81 = vadd.f32 %v77, %v80
    %82 = vst [vmem:[%s76] sm:$0xff] %v81
    // Predicated region
    $region22: #{tpu_custom_call.1} parent=1 // pred_check
      %p83 = pneg %p56
    $region23: #{tpu_custom_call.1} parent=1 // pred_check_branch
      %85 = sbr.rel (%p83) target = $region25
    $region24: #{tpu_custom_call.1} parent=1 // pred_region
      %v86 = vld [vmem:[#allocation2] sm:$0xff]
      %v87 = vld [vmem:[#allocation2 + $0x8] sm:$0xff]
      %v88 = vld [vmem:[#allocation2 + $0x10] sm:$0xff]
      %89 = vst [vmem:[#allocation8] sm:$0xff] %v86
      %90 = vst [vmem:[#allocation8 + $0x8] sm:$0xff] %v87
      %91 = vst [vmem:[#allocation8 + $0x10] sm:$0xff] %v88
    $region25: #{tpu_custom_call.1} parent=1 // pred_fallthru
      _
    // Predicated region
    $region26: #{tpu_custom_call.1} parent=1 // pred_check
      _
    $region27: #{tpu_custom_call.1} parent=1 // pred_check_branch
      %93 = sbr.rel (0) target = $region29
    $region28: #{tpu_custom_call.1} parent=1 // pred_region
      %95 = vsyncadd [#allocation5], 0
      %s96 = sshll.u32 [#allocation8], 4
      %s97 = int_to_ptr.vmem [resolvable:$true] %s96
      %s98 = sshll.u32 %s2, 4
      %s99 = int_to_ptr.hbm [resolvable:$true] %s98
      %104 = dma.vmem_to_hbm [thread:$0]  %s97, 384, %s99, [#allocation5], 128, 128, 8
    $region29: #{tpu_custom_call.1} parent=1 // pred_fallthru
      _
    // Predicated region
    $region30: #{tpu_custom_call.1} parent=1 // pred_check
      _
    $region31: #{tpu_custom_call.1} parent=1 // pred_check_branch
      %106 = sbr.rel (0) target = $region33
    $region32: #{tpu_custom_call.1} parent=1 // pred_region
      %108 = dma.done [#allocation5], 384
    $region33: #{tpu_custom_call.1} parent=1 // pred_fallthru
      _
    %109 = vsyncpa [#allocation4], 1
    %110 = vsyncpa [#allocation7], 1
    %111 = vsyncpa [#allocation5], 1

</llo_original>
